<compile_context>
chip_gen: v5e
topology: v5e:2x2
jax: 0.10.0
libtpu: 0.0.40
codegen_flags: <defaults>
</compile_context>

<pallas_src>
import functools

import jax
import jax.numpy as jnp
from jax import lax
from jax.experimental import pallas as pl
from jax.experimental.pallas import tpu as pltpu


def _multi_margin_kernel(*refs, margin, p, has_weight):
    """Per row-tile: partial (TM, 1) hinge-loss row sums (optionally weighted)."""
    if has_weight:
        x_ref, y_ref, wy_ref, part_ref = refs
    else:
        x_ref, y_ref, part_ref = refs
        wy_ref = None

    x = x_ref[...].astype(jnp.float32)          # (TM, C), cast in VMEM (free-ish on VPU)
    y = y_ref[...]                              # (TM, 1) int32
    tm, c = x.shape

    # Target-class gather via iota compare + lane reduce: x[n, y[n]].
    col = lax.broadcasted_iota(jnp.int32, (tm, c), 1)
    tgt_mask = col == y                                                   # (TM, C)
    x_tgt = jnp.sum(jnp.where(tgt_mask, x, 0.0), axis=1, keepdims=True)   # (TM, 1)

    # Clamped margin loss (the c == y term contributes max(margin, 0) and is
    # cancelled by the wrapper-side correction, exactly like the PyTorch module).
    loss = jnp.maximum(margin - x_tgt + x, 0.0)                           # (TM, C)
    if p == 2:
        loss = loss * loss

    row_sum = jnp.sum(loss, axis=1, keepdims=True)                        # (TM, 1)
    if has_weight:
        # weight[y[n]] gathered in the wrapper; applied post-reduce (per-row scale).
        row_sum = row_sum * wy_ref[...]
    part_ref[...] = row_sum


def _auto_tile_m(n, c, itemsize):
    """Largest row tile (multiple of 8, <=1024) targeting ~8 MiB per x buffer."""
    target_bytes = 8 << 20
    tm = target_bytes // max(1, c * itemsize)
    tm = int(max(8, min(1024, (tm // 8) * 8)))
    n_pad = ((n + 7) // 8) * 8
    return int(min(tm, n_pad))


def multi_margin_loss(x, y, *, p=1, margin=1.0, weight=None, reduction='mean',
                      tile_m=None):
    """Pallas implementation of modelzoo MultiMarginLoss.forward for 2-D x."""
    assert p in (1, 2), "MultiMarginLoss only supports p being 1 or 2."
    assert reduction in ('mean', 'sum'), "reduction must be 'mean' or 'sum'."
    n, c = x.shape
    itemsize = jnp.dtype(x.dtype).itemsize

    if tile_m is None:
        tm = _auto_tile_m(n, c, itemsize)
    else:
        tm = max(8, (int(tile_m) // 8) * 8)

    num_tiles = pl.cdiv(n, tm)
    n_out = num_tiles * tm

    has_weight = weight is not None
    y_col = y.astype(jnp.int32).reshape(n, 1)

    inputs = [x, y_col]  # x in its native dtype -- no wrapper-side f32 copy in HBM
    in_specs = [
        pl.BlockSpec((tm, c), lambda i: (i, 0)),   # x row tile
        pl.BlockSpec((tm, 1), lambda i: (i, 0)),   # y row tile
    ]
    if has_weight:
        w_f = weight.astype(jnp.float32)
        wy = jnp.take(w_f, y.astype(jnp.int32)).reshape(n, 1)   # O(N) gather in XLA glue
        inputs.append(wy)
        in_specs.append(pl.BlockSpec((tm, 1), lambda i: (i, 0)))

    kernel = functools.partial(_multi_margin_kernel, margin=float(margin), p=p,
                               has_weight=has_weight)

    # Explicit VMEM budget: double-buffered x tile + small (TM,1) aux buffers + slack.
    x_bytes = tm * c * itemsize
    aux_bytes = tm * 4 * (2 + (1 if has_weight else 0))
    needed = 2 * (x_bytes + aux_bytes)
    vmem_limit = int(min(48 << 20, max(needed + (4 << 20), 32 << 20)))

    partials = pl.pallas_call(
        kernel,
        out_shape=jax.ShapeDtypeStruct((n_out, 1), jnp.float32),
        grid_spec=pltpu.PrefetchScalarGridSpec(
            num_scalar_prefetch=0,
            grid=(num_tiles,),
            in_specs=in_specs,
            # Each grid step owns its output block -> axis is genuinely parallel.
            out_specs=pl.BlockSpec((tm, 1), lambda i: (i, 0)),
        ),
        compiler_params=pltpu.CompilerParams(
            dimension_semantics=("parallel",),
            vmem_limit_bytes=vmem_limit),
    )(*inputs)

    # Final sublane/scalar reduction in XLA glue; padded rows sliced off.
    loss_sum = jnp.sum(partials[:n, 0])

    # Scalar correction / reduction glue (matches the PyTorch module exactly for 2-D x).
    correction = jnp.float32(margin * margin if p == 2 else margin)
    if has_weight:
        w_sum = jnp.sum(wy)
        correction = correction * w_sum
        correction = correction / n          # len(x.shape) > 1
    correction = correction / c
    if reduction != 'mean':
        correction = correction * n
    if reduction == 'sum':
        reduced = loss_sum / c
    else:  # mean
        reduced = loss_sum / (n * c)
    return reduced - correction


def multi_margin_loss_ref(x, y, *, p=1, margin=1.0, weight=None, reduction='mean'):
    """Pure-JAX reference transcription of the PyTorch module."""
    x = x.astype(jnp.float32)
    x_tgt = jnp.take_along_axis(x, y[:, None].astype(jnp.int32), axis=-1)
    loss = jnp.maximum(margin - x_tgt + x, 0.0)
    if p == 2:
        loss = loss * loss
        correction = margin * margin
    else:
        correction = margin
    if weight is not None:
        w = weight.astype(jnp.float32)[y][:, None]
        loss = w * loss
        correction = correction * jnp.sum(w)
        correction = correction / x.shape[0]
    correction = correction / x.shape[-1]
    if reduction != 'mean':
        correction = correction * x.shape[0]
    if reduction == 'sum':
        loss = loss / x.shape[-1]
    red = jnp.mean(loss) if reduction == 'mean' else jnp.sum(loss)
    return red - correction


if __name__ == "__main__":
    key = jax.random.PRNGKey(0)
    kx, ky = jax.random.split(key)

    N, C = 10, 16  # small shapes; N not a multiple of 8 -> exercises row padding
    x = jax.random.normal(kx, (N, C), dtype=jnp.float32)
    y = jax.random.randint(ky, (N,), 0, C, dtype=jnp.int32)
    # Deterministic class weights (module __init__ weight arg: shape (C,)).
    weight = 0.5 + jnp.arange(C, dtype=jnp.float32) / C

    configs = [
        dict(p=1, margin=1.0, weight=None, reduction='mean'),
        dict(p=1, margin=1.0, weight=weight, reduction='mean'),
        dict(p=2, margin=0.7, weight=weight, reduction='sum'),
        dict(p=2, margin=1.3, weight=None, reduction='sum'),
    ]

    for cfg in configs:
        # Auto-sized (large) tile.
        out = jax.block_until_ready(multi_margin_loss(x, y, **cfg))
        ref = multi_margin_loss_ref(x, y, **cfg)
        assert jnp.allclose(out, ref, atol=1e-5, rtol=1e-5), (cfg, out, ref)
        # Forced small tile -> multiple grid steps on the parallel axis + padded tail.
        out2 = jax.block_until_ready(multi_margin_loss(x, y, tile_m=8, **cfg))
        assert jnp.allclose(out2, ref, atol=1e-5, rtol=1e-5), (cfg, out2, ref)

    # Native-dtype path: bf16 input stays bf16 in HBM; cast happens in-kernel.
    x_bf16 = x.astype(jnp.bfloat16)
    out_bf = jax.block_until_ready(
        multi_margin_loss(x_bf16, y, p=1, margin=1.0, weight=weight, reduction='mean'))
    ref_bf = multi_margin_loss_ref(x_bf16, y, p=1, margin=1.0, weight=weight,
                                   reduction='mean')
    assert jnp.allclose(out_bf, ref_bf, atol=1e-3, rtol=1e-3), (out_bf, ref_bf)

    print("KERNEL_OK")
</pallas_src>

<mosaic_0001>
module attributes {stable_mosaic.version = 11 : i64} {
  func.func @_multi_margin_kernel(%arg0: i32, %arg1: memref<16x16xf32, #tpu.memory_space<vmem>>, %arg2: memref<16x1xi32, #tpu.memory_space<vmem>>, %arg3: memref<16x1xf32, #tpu.memory_space<vmem>>) attributes {dimension_semantics = [#tpu.dimension_semantics<parallel>], iteration_bounds = array<i64: 1>, scalar_prefetch = 0 : i64, scratch_operands = 0 : i64, tpu.core_type = #tpu.core_type<tc>, window_params = [{transform_indices = @transform_0, window_bounds = array<i64: 16, 16>}, {transform_indices = @transform_1, window_bounds = array<i64: 16, 1>}, {transform_indices = @transform_2, window_bounds = array<i64: 16, 1>}]} {
    %c0 = arith.constant 0 : index
    %c0_0 = arith.constant 0 : index
    %0 = vector.load %arg1[%c0, %c0_0] : memref<16x16xf32, #tpu.memory_space<vmem>>, vector<16x16xf32>
    %c0_1 = arith.constant 0 : index
    %c0_2 = arith.constant 0 : index
    %1 = vector.load %arg2[%c0_1, %c0_2] : memref<16x1xi32, #tpu.memory_space<vmem>>, vector<16x1xi32>
    %2 = tpu.iota {dimensions = array<i32: 1>} : vector<16x16xi32>
    %3 = vector.broadcast %1 : vector<16x1xi32> to vector<16x16xi32>
    %4 = arith.cmpi eq, %2, %3 : vector<16x16xi32>
    %cst = arith.constant 0.000000e+00 : f32
    %5 = vector.broadcast %cst : f32 to vector<16x16xf32>
    %6 = arith.select %4, %0, %5 : vector<16x16xi1>, vector<16x16xf32>
    %cst_3 = arith.constant dense<0.000000e+00> : vector<16xf32>
    %7 = vector.multi_reduction <add>, %6, %cst_3 [1] : vector<16x16xf32> to vector<16xf32>
    %8 = vector.shape_cast %7 : vector<16xf32> to vector<16x1xf32>
    %cst_4 = arith.constant 1.000000e+00 : f32
    %9 = vector.broadcast %cst_4 : f32 to vector<16x1xf32>
    %10 = arith.subf %9, %8 : vector<16x1xf32>
    %11 = vector.broadcast %10 : vector<16x1xf32> to vector<16x16xf32>
    %12 = arith.addf %11, %0 : vector<16x16xf32>
    %cst_5 = arith.constant 0.000000e+00 : f32
    %13 = vector.broadcast %cst_5 : f32 to vector<16x16xf32>
    %14 = arith.maximumf %12, %13 : vector<16x16xf32>
    %cst_6 = arith.constant dense<0.000000e+00> : vector<16xf32>
    %15 = vector.multi_reduction <add>, %14, %cst_6 [1] : vector<16x16xf32> to vector<16xf32>
    %16 = vector.shape_cast %15 : vector<16xf32> to vector<16x1xf32>
    %c0_7 = arith.constant 0 : index
    %c0_8 = arith.constant 0 : index
    %17 = vector.load %arg3[%c0_7, %c0_8] : memref<16x1xf32, #tpu.memory_space<vmem>>, vector<16x1xf32>
    tpu.vector_store %arg3[%c0_7, %c0_8], %16 {strides = array<i32>} : memref<16x1xf32, #tpu.memory_space<vmem>>, vector<16x1xf32>,
    return
  }
  func.func @transform_0(%arg0: i32) -> (i32, i32) {
    %c0_i32 = arith.constant 0 : i32
    %c0_i32_0 = arith.constant 0 : i32
    return %arg0, %c0_i32 : i32, i32
  }
  func.func @transform_1(%arg0: i32) -> (i32, i32) {
    %c0_i32 = arith.constant 0 : i32
    %c0_i32_0 = arith.constant 0 : i32
    return %arg0, %c0_i32 : i32, i32
  }
  func.func @transform_2(%arg0: i32) -> (i32, i32) {
    %c0_i32 = arith.constant 0 : i32
    %c0_i32_0 = arith.constant 0 : i32
    return %arg0, %c0_i32 : i32, i32
  }
}

</mosaic_0001>

<llo_original>
// kernel: tpu_custom_call.1
$region0: #{tpu_custom_call.1}
  #allocation0 [shape = 'u32[]', space=smem, size = 0x4, offset = 0x4, fixed_abs, tag = 'smem constant byte address 0x4 - core index']
  #allocation1 [shape = 'u32[72,128]{1,0:T(1,128)}', space=vmem, size = 0x9000, scoped, tag = 'internal scratch']
  %s0 = inlined_call_operand.vmem [shape: f32[10,16], index: 0, kind: input, shape index: {}]
  %s1 = inlined_call_operand.vmem [shape: s32[10,1], index: 1, kind: input, shape index: {}]
  %s2 = inlined_call_operand.vmem [shape: f32[16,1], index: 2, kind: output, shape index: {}]
  %s3 = sld [smem:[#allocation0]]
  $region18: #{tpu_custom_call.1} parent=0
    _
  %s5 = ssub.s32 1, %s3
  %s6 = scalar_select 0, %s5, %s3
  // Predicated region
  $region2: #{tpu_custom_call.1} parent=0 // pred_check
    _
  $region3: #{tpu_custom_call.1} parent=0 // pred_check_branch
    %8 = sbr.rel (0) target = $region5
  $region4: #{tpu_custom_call.1} parent=0 // pred_region
    _
  $region5: #{tpu_custom_call.1} parent=0 // pred_fallthru
    _
  // Predicated region
  $region6: #{tpu_custom_call.1} parent=0 // pred_check
    _
  $region7: #{tpu_custom_call.1} parent=0 // pred_check_branch
    %10 = sbr.rel (0) target = $region9
  $region8: #{tpu_custom_call.1} parent=0 // pred_region
    _
  $region9: #{tpu_custom_call.1} parent=0 // pred_fallthru
    _
  %v11 = vld [vmem:[%s0] sm:$0xff]
  %v12 = vld [vmem:[%s0 + $0x8] sm:$0xff]
  %v13 = vld [vmem:[%s1] sm:$0xff]
  %v14 = vld [vmem:[%s1 + $0x8] sm:$0xff]
  %v15 = vlaneseq
  %v16 = vand.u32 %v15, 127
  %17 = vset.pattern.permute.xlu0 0
  %18 = vperm.xlu0 %17, %v13
  %v19 = vpop.permute.xlu0 %18
  %20 = vset.pattern.permute.xlu0 0
  %21 = vperm.xlu0 %20, %v14
  %v22 = vpop.permute.xlu0 %21
  %vm23 = vcmp.eq.s32.totalorder %v16, %v19
  %vm24 = vcmp.eq.s32.totalorder %v16, %v22
  %v25 = vsel %vm23, %v11, 0.0
  %v26 = vsel %vm24, %v12, 0.0
  %vm27 = vcmask 130048
  %v28 = vsel %vm27, %v25, 0.0
  %29 = vadd.xlane.f32.xlu0 %v28
  %v30 = vpop.xlane.xlu0 %29
  %v31 = vsel %vm27, %v26, 0.0
  %32 = vadd.xlane.f32.xlu0 %v31
  %v33 = vpop.xlane.xlu0 %32
  %v34 = vsub.f32 1.0, %v30
  %v35 = vsub.f32 1.0, %v33
  %v36 = vadd.f32 %v34, %v11
  %v37 = vadd.f32 %v35, %v12
  %v38 = vmax.f32 %v36, 0.0
  %v39 = vmax.f32 %v37, 0.0
  %v40 = vsel %vm27, %v38, 0.0
  %41 = vadd.xlane.f32.xlu0 %v40
  %v42 = vpop.xlane.xlu0 %41
  %v43 = vsel %vm27, %v39, 0.0
  %44 = vadd.xlane.f32.xlu0 %v43
  %v45 = vpop.xlane.xlu0 %44
  %vm46 = vcmask 7168
  %47 = vst.msk [vmem:[%s2] sm:$0xff] %vm46, %v42
  %48 = vst.msk [vmem:[%s2 + $0x8] sm:$0xff] %vm46, %v45
  // Predicated region
  $region10: #{tpu_custom_call.1} parent=0 // pred_check
    _
  $region11: #{tpu_custom_call.1} parent=0 // pred_check_branch
    %50 = sbr.rel (0) target = $region13
  $region12: #{tpu_custom_call.1} parent=0 // pred_region
    _
  $region13: #{tpu_custom_call.1} parent=0 // pred_fallthru
    _
  // Predicated region
  $region14: #{tpu_custom_call.1} parent=0 // pred_check
    _
  $region15: #{tpu_custom_call.1} parent=0 // pred_check_branch
    %52 = sbr.rel (0) target = $region17
  $region16: #{tpu_custom_call.1} parent=0 // pred_region
    _
  $region17: #{tpu_custom_call.1} parent=0 // pred_fallthru
    _

</llo_original>
